<compile_context>
chip_gen: v5e
topology: v5e:2x2
jax: 0.10.0
libtpu: 0.0.40
codegen_flags: <defaults>
</compile_context>

<pallas_src>
import jax
import jax.numpy as jnp
from jax.experimental import pallas as pl
from jax.experimental.pallas import tpu as pltpu

_LANE = 128
_TARGET_BLOCK_BYTES = 2 * 1024 * 1024  # ~2 MiB per operand per block


def _bernoulli_log_prob_kernel(logits_ref, target_ref, out_ref):
    # Load in the wire dtype, compute in f32 (kernel is HBM-bound; f32 keeps
    # exp/log1p accurate), store in the output dtype.
    x = logits_ref[...].astype(jnp.float32)
    z = target_ref[...].astype(jnp.float32)
    # Numerically-stable BCE-with-logits (matches PyTorch's formulation):
    #   loss = max(x, 0) - x*z + log1p(exp(-|x|))
    loss = jnp.maximum(x, 0.0) - x * z + jnp.log1p(jnp.exp(-jnp.abs(x)))
    out_ref[...] = (-loss).astype(out_ref.dtype)


def _round_up(n: int, m: int) -> int:
    return ((n + m - 1) // m) * m


def bernoulli_log_prob(logits: jax.Array, target: jax.Array) -> jax.Array:
    """Elementwise -BCEWithLogits; output shape == input shape, dtype promoted."""
    assert logits.shape == target.shape, "logits/target must have the same shape"
    orig_shape = logits.shape
    out_dtype = jnp.promote_types(logits.dtype, target.dtype)

    total = 1
    for d in orig_shape:
        total *= d
    if total == 0:
        return jnp.zeros(orig_shape, dtype=out_dtype)

    it_x = jnp.dtype(logits.dtype).itemsize
    it_z = jnp.dtype(target.dtype).itemsize
    it_o = jnp.dtype(out_dtype).itemsize
    max_item = max(it_x, it_z, it_o)
    min_item = min(it_x, it_z, it_o)
    # Sublane packing granularity: 8 rows for 32-bit, 16 for bf16, 32 for 8-bit.
    sublane_mult = max(8, 32 // min_item)

    # Lane-dense (rows, 128) slab; pad only when total isn't a lane multiple.
    rows = pl.cdiv(total, _LANE)
    padded_total = rows * _LANE
    needs_pad = padded_total != total

    # Constant-byte block: ~2 MiB for the widest operand, sublane-aligned.
    target_rows = (_TARGET_BLOCK_BYTES // (_LANE * max_item)) // sublane_mult * sublane_mult
    target_rows = max(sublane_mult, target_rows)

    if rows <= 2 * sublane_mult:
        # Tiny input: a single block covering the whole slab (block == full dim,
        # so the (8,128) divisibility rule doesn't apply).
        block_rows = rows
    else:
        # At least 2 grid steps (v7x megacore sharding), at most ~2 MiB/operand.
        block_rows = min(target_rows, _round_up(pl.cdiv(rows, 2), sublane_mult))
    grid = (pl.cdiv(rows, block_rows),)

    def _prep(a):
        flat = a.reshape(-1)
        if needs_pad:
            # Zero padding is numerically safe: loss(0, 0) = log(2), finite.
            flat = jnp.pad(flat, (0, padded_total - total))
        return flat.reshape(rows, _LANE)

    x2 = _prep(logits)
    z2 = _prep(target)

    cost = pl.CostEstimate(
        flops=5 * total,
        transcendentals=2 * total,
        bytes_accessed=total * (it_x + it_z + it_o),
    )

    out2 = pl.pallas_call(
        _bernoulli_log_prob_kernel,
        out_shape=jax.ShapeDtypeStruct((rows, _LANE), out_dtype),
        grid_spec=pl.GridSpec(
            grid=grid,
            in_specs=[
                pl.BlockSpec((block_rows, _LANE), lambda i: (i, 0)),
                pl.BlockSpec((block_rows, _LANE), lambda i: (i, 0)),
            ],
            out_specs=pl.BlockSpec((block_rows, _LANE), lambda i: (i, 0)),
        ),
        compiler_params=pltpu.CompilerParams(
            dimension_semantics=("parallel",),  # independent tiles -> both TCs on v7x
            vmem_limit_bytes=32 * 1024 * 1024,  # 3 operands x 2 bufs x ~2 MiB << 32 MiB
        ),
        cost_estimate=cost,
    )(x2, z2)

    out_flat = out2.reshape(-1)
    if needs_pad:
        out_flat = out_flat[:total]
    return out_flat.reshape(orig_shape)


def _reference(logits, target):
    out_dtype = jnp.promote_types(logits.dtype, target.dtype)
    x = logits.astype(jnp.float32)
    z = target.astype(jnp.float32)
    loss = jnp.maximum(x, 0.0) - x * z + jnp.log1p(jnp.exp(-jnp.abs(x)))
    return (-loss).astype(out_dtype)


if __name__ == "__main__":
    key = jax.random.PRNGKey(0)
    k1, k2, k3, k4, k5, k6 = jax.random.split(key, 6)

    # Small NCHW input consistent with the VAE decoder-logits use-case.
    B, C, H, W = 2, 4, 16, 16
    logits = jax.random.normal(k1, (B, C, H, W), dtype=jnp.float32) * 3.0
    target = (jax.random.uniform(k2, (B, C, H, W)) > 0.5).astype(jnp.float32)

    out = jax.block_until_ready(bernoulli_log_prob(logits, target))
    ref = _reference(logits, target)
    assert out.shape == logits.shape and out.dtype == ref.dtype
    assert jnp.allclose(out, ref, atol=1e-5, rtol=1e-5), "mismatch vs reference (f32)"

    # Odd, non-128-divisible shape to exercise the padding path.
    logits2 = jax.random.normal(k3, (3, 5, 7), dtype=jnp.float32) * 2.0
    target2 = (jax.random.uniform(k4, (3, 5, 7)) > 0.5).astype(jnp.float32)
    out2 = jax.block_until_ready(bernoulli_log_prob(logits2, target2))
    ref2 = _reference(logits2, target2)
    assert jnp.allclose(out2, ref2, atol=1e-5, rtol=1e-5), "mismatch vs reference (padded)"

    # Larger, lane-aligned shape: exercises the multi-block grid and ragged
    # final block (no wrapper-side pad/slice on this path).
    logits3 = jax.random.normal(k5, (3, 1000, 128), dtype=jnp.float32) * 2.0
    target3 = (jax.random.uniform(k6, (3, 1000, 128)) > 0.5).astype(jnp.float32)
    out3 = jax.block_until_ready(bernoulli_log_prob(logits3, target3))
    ref3 = _reference(logits3, target3)
    assert jnp.allclose(out3, ref3, atol=1e-5, rtol=1e-5), "mismatch vs reference (ragged grid)"

    # bf16 I/O path (dtype stays bf16 on the wire; math in f32 inside kernel).
    logits_bf = logits.astype(jnp.bfloat16)
    target_bf = target.astype(jnp.bfloat16)
    out_bf = jax.block_until_ready(bernoulli_log_prob(logits_bf, target_bf))
    ref_bf = _reference(logits_bf, target_bf)
    assert out_bf.dtype == jnp.bfloat16
    assert jnp.allclose(out_bf.astype(jnp.float32), ref_bf.astype(jnp.float32),
                        atol=2e-2, rtol=2e-2), "mismatch vs reference (bf16)"

    print("KERNEL_OK")
</pallas_src>

<mosaic_0001>
module attributes {stable_mosaic.version = 11 : i64} {
  func.func @_bernoulli_log_prob_kernel(%arg0: i32, %arg1: memref<16x128xf32, #tpu.memory_space<vmem>>, %arg2: memref<16x128xf32, #tpu.memory_space<vmem>>, %arg3: memref<16x128xf32, #tpu.memory_space<vmem>>) attributes {dimension_semantics = [#tpu.dimension_semantics<parallel>], iteration_bounds = array<i64: 1>, scalar_prefetch = 0 : i64, scratch_operands = 0 : i64, tpu.core_type = #tpu.core_type<tc>, window_params = [{transform_indices = @transform_0, window_bounds = array<i64: 16, 128>}, {transform_indices = @transform_1, window_bounds = array<i64: 16, 128>}, {transform_indices = @transform_2, window_bounds = array<i64: 16, 128>}]} {
    %c0 = arith.constant 0 : index
    %c0_0 = arith.constant 0 : index
    %0 = vector.load %arg1[%c0, %c0_0] : memref<16x128xf32, #tpu.memory_space<vmem>>, vector<16x128xf32>
    %c0_1 = arith.constant 0 : index
    %c0_2 = arith.constant 0 : index
    %1 = vector.load %arg2[%c0_1, %c0_2] : memref<16x128xf32, #tpu.memory_space<vmem>>, vector<16x128xf32>
    %cst = arith.constant 0.000000e+00 : f32
    %2 = vector.broadcast %cst : f32 to vector<16x128xf32>
    %3 = arith.maximumf %0, %2 : vector<16x128xf32>
    %4 = arith.mulf %0, %1 : vector<16x128xf32>
    %5 = arith.subf %3, %4 : vector<16x128xf32>
    %6 = math.absf %0 : vector<16x128xf32>
    %cst_3 = arith.constant 0.000000e+00 : f32
    %7 = vector.broadcast %cst_3 : f32 to vector<16x128xf32>
    %8 = arith.subf %7, %6 : vector<16x128xf32>
    %9 = math.exp %8 : vector<16x128xf32>
    %10 = math.log1p %9 : vector<16x128xf32>
    %11 = arith.addf %5, %10 : vector<16x128xf32>
    %cst_4 = arith.constant 0.000000e+00 : f32
    %12 = vector.broadcast %cst_4 : f32 to vector<16x128xf32>
    %13 = arith.subf %12, %11 : vector<16x128xf32>
    %c0_5 = arith.constant 0 : index
    %c0_6 = arith.constant 0 : index
    %14 = vector.load %arg3[%c0_5, %c0_6] : memref<16x128xf32, #tpu.memory_space<vmem>>, vector<16x128xf32>
    tpu.vector_store %arg3[%c0_5, %c0_6], %13 {strides = array<i32>} : memref<16x128xf32, #tpu.memory_space<vmem>>, vector<16x128xf32>,
    return
  }
  func.func @transform_0(%arg0: i32) -> (i32, i32) {
    %c0_i32 = arith.constant 0 : i32
    %c0_i32_0 = arith.constant 0 : i32
    return %arg0, %c0_i32 : i32, i32
  }
  func.func @transform_1(%arg0: i32) -> (i32, i32) {
    %c0_i32 = arith.constant 0 : i32
    %c0_i32_0 = arith.constant 0 : i32
    return %arg0, %c0_i32 : i32, i32
  }
  func.func @transform_2(%arg0: i32) -> (i32, i32) {
    %c0_i32 = arith.constant 0 : i32
    %c0_i32_0 = arith.constant 0 : i32
    return %arg0, %c0_i32 : i32, i32
  }
}

</mosaic_0001>

<llo_original>
// kernel: tpu_custom_call.1
$region0: #{tpu_custom_call.1}
  #allocation0 [shape = 'u32[]', space=smem, size = 0x4, offset = 0x4, fixed_abs, tag = 'smem constant byte address 0x4 - core index']
  #allocation1 [shape = 'u32[72,128]{1,0:T(1,128)}', space=vmem, size = 0x9000, scoped, tag = 'internal scratch']
  %s0 = inlined_call_operand.hbm [shape: f32[16,128], index: 0, kind: input, shape index: {}]
  %s1 = inlined_call_operand.hbm [shape: f32[16,128], index: 1, kind: input, shape index: {}]
  %s2 = inlined_call_operand.hbm [shape: f32[16,128], index: 2, kind: output, shape index: {}]
  %s3 = sld [smem:[#allocation0]]
  $region26: #{tpu_custom_call.1} parent=0
    _
  %s5 = ssub.s32 1, %s3
  %s6 = scalar_select 0, %s5, %s3
  $region1: #{tpu_custom_call.1} parent=0
    #allocation2 [shape = 'u8[8192]{0}', space=vmem, size = 0x2000, scoped, tag = 'input window, operand 0, single buffered']
    #allocation3 [shape = 's32[1]{0}', space=sflag, size = 0x4, scoped, tag = 'scoped memory for tpu_custom_call.1']
    #allocation4 [shape = 's32[1]{0}', space=sflag, size = 0x4, scoped, tag = 'scoped memory for tpu_custom_call.1']
    #allocation5 [shape = 'u8[8192]{0}', space=vmem, size = 0x2000, scoped, tag = 'input window, operand 1, single buffered']
    #allocation6 [shape = 's32[1]{0}', space=sflag, size = 0x4, scoped, tag = 'scoped memory for tpu_custom_call.1']
    #allocation7 [shape = 'u8[8192]{0}', space=vmem, size = 0x2000, scoped, tag = 'output window, operand 0, single buffered']
    %7 = vsyncpa [#allocation3], 0
    %8 = vsyncpa [#allocation6], 0
    %9 = vsyncpa [#allocation4], 0
    // Predicated region
    $region2: #{tpu_custom_call.1} parent=1 // pred_check
      _
    $region3: #{tpu_custom_call.1} parent=1 // pred_check_branch
      %11 = sbr.rel (0) target = $region5
    $region4: #{tpu_custom_call.1} parent=1 // pred_region
      %13 = vsyncadd [#allocation3], 0
      %s14 = sshll.u32 %s0, 4
      %s15 = int_to_ptr.hbm [resolvable:$true] %s14
      %s16 = sshll.u32 [#allocation2], 4
      %s17 = int_to_ptr.vmem [resolvable:$true] %s16
      %22 = dma.hbm_to_vmem [thread:$0]  %s15, 256, %s17, [#allocation3], 128, 128, 8
    $region5: #{tpu_custom_call.1} parent=1 // pred_fallthru
      _
    // Predicated region
    $region6: #{tpu_custom_call.1} parent=1 // pred_check
      _
    $region7: #{tpu_custom_call.1} parent=1 // pred_check_branch
      %24 = sbr.rel (0) target = $region9
    $region8: #{tpu_custom_call.1} parent=1 // pred_region
      %26 = vsyncadd [#allocation6], 0
      %s27 = sshll.u32 %s1, 4
      %s28 = int_to_ptr.hbm [resolvable:$true] %s27
      %s29 = sshll.u32 [#allocation5], 4
      %s30 = int_to_ptr.vmem [resolvable:$true] %s29
      %35 = dma.hbm_to_vmem [thread:$0]  %s28, 256, %s30, [#allocation6], 128, 128, 8
    $region9: #{tpu_custom_call.1} parent=1 // pred_fallthru
      _
    // Predicated region
    $region10: #{tpu_custom_call.1} parent=1 // pred_check
      _
    $region11: #{tpu_custom_call.1} parent=1 // pred_check_branch
      %37 = sbr.rel (0) target = $region13
    $region12: #{tpu_custom_call.1} parent=1 // pred_region
      %39 = dma.done [#allocation3], 256
    $region13: #{tpu_custom_call.1} parent=1 // pred_fallthru
      _
    // Predicated region
    $region14: #{tpu_custom_call.1} parent=1 // pred_check
      _
    $region15: #{tpu_custom_call.1} parent=1 // pred_check_branch
      %41 = sbr.rel (0) target = $region17
    $region16: #{tpu_custom_call.1} parent=1 // pred_region
      %43 = dma.done [#allocation6], 256
    $region17: #{tpu_custom_call.1} parent=1 // pred_fallthru
      _
    %v44 = vld [vmem:[#allocation2] sm:$0xff]
    %v45 = vld [vmem:[#allocation2 + $0x8] sm:$0xff]
    %v46 = vld [vmem:[#allocation5] sm:$0xff]
    %v47 = vld [vmem:[#allocation5 + $0x8] sm:$0xff]
    %v48 = vmax.f32 %v44, 0.0
    %v49 = vmax.f32 %v45, 0.0
    %v50 = vmul.f32 %v44, %v46
    %v51 = vmul.f32 %v45, %v47
    %v52 = vsub.f32 %v48, %v50
    %v53 = vsub.f32 %v49, %v51
    %v54 = vand.u32 2147483647, %v44
    %v55 = vand.u32 2147483647, %v45
    %v56 = vsub.f32 0.0, %v54
    %v57 = vsub.f32 0.0, %v55
    %v58 = vmul.f32 %v56, 1.442695
    %v59 = vpow.pop %v58
    %v60 = vmul.f32 %v57, 1.442695
    %v61 = vpow.pop %v60
    %v62 = vadd.f32 %v59, 1.0
    %v63 = vlog2.pop %v62
    %v64 = vmul.f32 %v63, 0.6931472
    %v65 = vmul.f32 -0.5, %v59
    %v66 = vadd.f32 %v65, 1.0
    %v67 = vmul.f32 %v66, %v59
    %v68 = vand.u32 2147483647, %v59
    %vm69 = vcmp.lt.f32.partialorder %v68, 0.0004427343
    %v70 = vsel %vm69, %v67, %v64
    %v71 = vadd.f32 %v61, 1.0
    %v72 = vlog2.pop %v71
    %v73 = vmul.f32 %v72, 0.6931472
    %v74 = vmul.f32 -0.5, %v61
    %v75 = vadd.f32 %v74, 1.0
    %v76 = vmul.f32 %v75, %v61
    %v77 = vand.u32 2147483647, %v61
    %vm78 = vcmp.lt.f32.partialorder %v77, 0.0004427343
    %v79 = vsel %vm78, %v76, %v73
    %v80 = vadd.f32 %v52, %v70
    %v81 = vadd.f32 %v53, %v79
    %v82 = vsub.f32 0.0, %v80
    %v83 = vsub.f32 0.0, %v81
    %84 = vst [vmem:[#allocation7] sm:$0xff] %v82
    %85 = vst [vmem:[#allocation7 + $0x8] sm:$0xff] %v83
    // Predicated region
    $region18: #{tpu_custom_call.1} parent=1 // pred_check
      _
    $region19: #{tpu_custom_call.1} parent=1 // pred_check_branch
      %87 = sbr.rel (0) target = $region21
    $region20: #{tpu_custom_call.1} parent=1 // pred_region
      %89 = vsyncadd [#allocation4], 0
      %s90 = sshll.u32 [#allocation7], 4
      %s91 = int_to_ptr.vmem [resolvable:$true] %s90
      %s92 = sshll.u32 %s2, 4
      %s93 = int_to_ptr.hbm [resolvable:$true] %s92
      %98 = dma.vmem_to_hbm [thread:$0]  %s91, 256, %s93, [#allocation4], 128, 128, 8
    $region21: #{tpu_custom_call.1} parent=1 // pred_fallthru
      _
    // Predicated region
    $region22: #{tpu_custom_call.1} parent=1 // pred_check
      _
    $region23: #{tpu_custom_call.1} parent=1 // pred_check_branch
      %100 = sbr.rel (0) target = $region25
    $region24: #{tpu_custom_call.1} parent=1 // pred_region
      %102 = dma.done [#allocation4], 256
    $region25: #{tpu_custom_call.1} parent=1 // pred_fallthru
      _
    %103 = vsyncpa [#allocation3], 1
    %104 = vsyncpa [#allocation6], 1
    %105 = vsyncpa [#allocation4], 1

</llo_original>
